<compile_context>
chip_gen: v7x
topology: tpu7x:2x2x1
jax: 0.10.0
libtpu: 0.0.40
codegen_flags: <defaults>
</compile_context>

<pallas_src>
import functools

import numpy as np
import jax
import jax.numpy as jnp
from jax.experimental import pallas as pl
from jax.experimental.pallas import tpu as pltpu

_LANE = 128
# Explicit VMEM budget: safe on every generation (v7x physical = 64 MiB).
_VMEM_LIMIT_BYTES = 32 * 1024 * 1024
# Budget for the double-buffered weight tiles (2 x H x TE x itemsize).
_W_DBLBUF_BUDGET_BYTES = 16 * 1024 * 1024


def _round_up(x, m):
    return (x + m - 1) // m * m


def _pick_edge_tile(hidden_size, e_pad, itemsize, resident_bytes):
    """Largest multiple-of-128 edge tile whose double-buffered weight tiles
    (plus the resident activation block) fit the VMEM budget and that evenly
    divides the padded edge dimension."""
    budget = max(_W_DBLBUF_BUDGET_BYTES - resident_bytes, _LANE * 2 * hidden_size * itemsize)
    te = (budget // (2 * hidden_size * itemsize)) // _LANE * _LANE
    te = max(_LANE, min(int(te), e_pad))
    while e_pad % te:
        te -= _LANE
    return te


# ----------------------------- Pallas kernels ----------------------------- #

def _row_linear_kernel(x_ref, w_ref, b_ref, o_ref):
    """One edge tile of: (1, H) @ (H, TE) + bias.

    x_ref: (1, H)   activation row (resident across the grid)
    w_ref: (H, TE)  streamed weight tile
    b_ref: (1, TE)  bias tile (f32)
    o_ref: (1, TE)  edge-logit tile (f32)
    """
    o_ref[...] = (
        jnp.dot(x_ref[...], w_ref[...], preferred_element_type=jnp.float32)
        + b_ref[...]
    ).astype(o_ref.dtype)


def _mean_linear_kernel(e_ref, w_ref, b_ref, o_ref, *, inv_s):
    """embedding_only path: mean over tokens (f32 sum * 1/S), then one edge tile.

    e_ref: (S, H)   last batch element of the embedding output (resident).
    The reduction is recomputed per tile (hidden under the weight DMA), which
    keeps the edge grid axis free of cross-step state -> safe for "parallel".
    """
    x = jnp.sum(e_ref[...].astype(jnp.float32), axis=0, keepdims=True) * inv_s
    x = x.astype(w_ref.dtype)
    o_ref[...] = (
        jnp.dot(x, w_ref[...], preferred_element_type=jnp.float32)
        + b_ref[...]
    ).astype(o_ref.dtype)


# ------------------------------- Wrappers --------------------------------- #

def _tiled_linear(x, w_t, bias, kernel):
    """x: (R, H) activation block; w_t: (H, E_pad); bias: (1, E_pad) f32.

    Streams W over the (padded, lane-dense) edge dimension with a parallel
    grid; the activation block stays resident in VMEM (constant index_map).
    Returns (1, E_pad) f32 logits.
    """
    hidden_size, e_pad = w_t.shape
    resident_bytes = x.size * x.dtype.itemsize
    te = _pick_edge_tile(hidden_size, e_pad, w_t.dtype.itemsize, resident_bytes)
    grid = (e_pad // te,)

    return pl.pallas_call(
        kernel,
        out_shape=jax.ShapeDtypeStruct((1, e_pad), jnp.float32),
        grid_spec=pltpu.PrefetchScalarGridSpec(
            num_scalar_prefetch=0,
            grid=grid,
            in_specs=[
                # Activation block: same block every step -> DMA'd once, resident.
                pl.BlockSpec(x.shape, lambda j: (0, 0)),
                # Weight: stream (H, TE) tiles over the edge dimension.
                pl.BlockSpec((hidden_size, te), lambda j: (0, j)),
                # Bias tile.
                pl.BlockSpec((1, te), lambda j: (0, j)),
            ],
            out_specs=pl.BlockSpec((1, te), lambda j: (0, j)),
        ),
        compiler_params=pltpu.CompilerParams(
            dimension_semantics=("parallel",),
            vmem_limit_bytes=_VMEM_LIMIT_BYTES,
        ),
    )(x, w_t, bias)


@functools.partial(jax.jit, static_argnames=("num_edges",))
def edge_network_forward(last_hidden_state, w_t, bias, num_edges):
    """EdgeNetwork.forward (embedding_only=False) given the backbone's
    last_hidden_state [B, S, H]. Returns (num_edges,) f32 logits."""
    # TODO(synk): the pretrained LLM backbone + tokenizer have no Pallas
    # equivalent; last_hidden_state is taken as the kernel input.
    x = last_hidden_state[0:1, -1, :]                # (1, H): only row needed
    x = x.astype(w_t.dtype)
    out = _tiled_linear(x, w_t, bias, _row_linear_kernel)
    return out[0, :num_edges]


@functools.partial(jax.jit, static_argnames=("num_edges",))
def edge_network_forward_embedding_only(embeddings, w_t, bias, num_edges):
    """EdgeNetwork.forward (embedding_only=True) given the input-embedding
    layer output [B, S, H]. Returns (num_edges,) f32 logits."""
    b, s, h = embeddings.shape
    e_last = embeddings[-1]                          # (S, H): only last batch element
    e_last = e_last.astype(w_t.dtype)
    kernel = functools.partial(_mean_linear_kernel, inv_s=1.0 / s)
    out = _tiled_linear(e_last, w_t, bias, kernel)
    return out[0, :num_edges]


def make_edge_network_params(key, hidden_size, num_edges,
                             initial_probability=0.5, dtype=jnp.float32):
    """Stand-in for nn.Linear(hidden_size, num_edges) params.

    Weight ~ U(-1/sqrt(H), 1/sqrt(H)) (torch default); bias = logit(p).
    Returns (W^T padded to [H, E_pad] in `dtype`, bias [1, E_pad] in f32),
    with E_pad = round_up(num_edges, 128) for lane-dense stores.
    """
    bound = 1.0 / np.sqrt(hidden_size)
    w = jax.random.uniform(
        key, (num_edges, hidden_size), jnp.float32, minval=-bound, maxval=bound
    )
    b_val = float(np.log(initial_probability / (1.0 - initial_probability)))
    e_pad = max(_LANE, _round_up(num_edges, _LANE))
    w_t = jnp.zeros((hidden_size, e_pad), jnp.float32).at[:, :num_edges].set(w.T)
    bias = jnp.zeros((1, e_pad), jnp.float32).at[:, :num_edges].set(b_val)
    return w_t.astype(dtype), bias


# --------------------------------- Main ------------------------------------ #

if __name__ == "__main__":
    # Synthetic hidden states / embeddings of the right shape (no LLM backbone).
    B, S, H, E = 2, 8, 32, 8               # batch, seq, hidden_size, num_edges
    key = jax.random.PRNGKey(0)
    k_h, k_e, k_w = jax.random.split(key, 3)

    last_hidden_state = jax.random.normal(k_h, (B, S, H), jnp.float32)
    embeddings = jax.random.normal(k_e, (B, S, H), jnp.float32)

    # --- f32 weights: strict correctness check against plain-JAX reference ---
    w_t, bias = make_edge_network_params(k_w, H, E, initial_probability=0.3)

    logits = jax.block_until_ready(
        edge_network_forward(last_hidden_state, w_t, bias, E))
    logits_emb = jax.block_until_ready(
        edge_network_forward_embedding_only(embeddings, w_t, bias, E))

    ref_main = last_hidden_state[0, -1, :] @ w_t[:, :E] + bias[0, :E]
    ref_emb = jnp.mean(embeddings[-1], axis=0) @ w_t[:, :E] + bias[0, :E]
    assert logits.shape == (E,) and logits_emb.shape == (E,)
    np.testing.assert_allclose(np.asarray(logits), np.asarray(ref_main),
                               rtol=1e-5, atol=1e-5)
    np.testing.assert_allclose(np.asarray(logits_emb), np.asarray(ref_emb),
                               rtol=1e-5, atol=1e-5)

    # --- bf16 weight-streaming variant (halves HBM weight traffic; f32 acc) ---
    w_t_bf16, bias_bf16 = make_edge_network_params(
        k_w, H, E, initial_probability=0.3, dtype=jnp.bfloat16)
    logits_bf16 = jax.block_until_ready(
        edge_network_forward(last_hidden_state, w_t_bf16, bias_bf16, E))
    ref_bf16 = (
        jnp.dot(last_hidden_state[0:1, -1, :].astype(jnp.bfloat16),
                w_t_bf16[:, :E], preferred_element_type=jnp.float32)[0]
        + bias_bf16[0, :E]
    )
    np.testing.assert_allclose(np.asarray(logits_bf16), np.asarray(ref_bf16),
                               rtol=2e-2, atol=2e-2)

    print("KERNEL_OK")
</pallas_src>

<mosaic_0001>
module attributes {stable_mosaic.version = 11 : i64} {
  func.func @_row_linear_kernel(%arg0: i32, %arg1: memref<1x32xf32, #tpu.memory_space<vmem>>, %arg2: memref<32x128xf32, #tpu.memory_space<vmem>>, %arg3: memref<1x128xf32, #tpu.memory_space<vmem>>, %arg4: memref<1x128xf32, #tpu.memory_space<vmem>>) attributes {dimension_semantics = [#tpu.dimension_semantics<parallel>], iteration_bounds = array<i64: 1>, scalar_prefetch = 0 : i64, scratch_operands = 0 : i64, tpu.core_type = #tpu.core_type<tc>, window_params = [{pipeline_mode = #tpu.pipeline_mode<synchronous>, transform_indices = @transform_0, window_bounds = array<i64: 1, 32>}, {transform_indices = @transform_1, window_bounds = array<i64: 32, 128>}, {transform_indices = @transform_2, window_bounds = array<i64: 1, 128>}, {transform_indices = @transform_3, window_bounds = array<i64: 1, 128>}]} {
    %c0 = arith.constant 0 : index
    %c0_0 = arith.constant 0 : index
    %0 = vector.load %arg1[%c0, %c0_0] : memref<1x32xf32, #tpu.memory_space<vmem>>, vector<1x32xf32>
    %c0_1 = arith.constant 0 : index
    %c0_2 = arith.constant 0 : index
    %1 = vector.load %arg2[%c0_1, %c0_2] : memref<32x128xf32, #tpu.memory_space<vmem>>, vector<32x128xf32>
    %cst = arith.constant dense<0.000000e+00> : vector<1x128xf32>
    %2 = tpu.matmul %0, %1, %cst {dimension_numbers = #tpu.dot_dimension_numbers<[1], [0], [0], [1], [0, 0, 1, 1], [], []>} : vector<1x32xf32>, vector<32x128xf32>, vector<1x128xf32> -> vector<1x128xf32>
    %c0_3 = arith.constant 0 : index
    %c0_4 = arith.constant 0 : index
    %3 = vector.load %arg3[%c0_3, %c0_4] : memref<1x128xf32, #tpu.memory_space<vmem>>, vector<1x128xf32>
    %4 = arith.addf %2, %3 : vector<1x128xf32>
    %c0_5 = arith.constant 0 : index
    %c0_6 = arith.constant 0 : index
    %5 = vector.load %arg4[%c0_5, %c0_6] : memref<1x128xf32, #tpu.memory_space<vmem>>, vector<1x128xf32>
    tpu.vector_store %arg4[%c0_5, %c0_6], %4 {strides = array<i32>} : memref<1x128xf32, #tpu.memory_space<vmem>>, vector<1x128xf32>,
    return
  }
  func.func @transform_0(%arg0: i32) -> (i32, i32) {
    %c0_i32 = arith.constant 0 : i32
    %c0_i32_0 = arith.constant 0 : i32
    %c0_i32_1 = arith.constant 0 : i32
    return %c0_i32, %c0_i32_0 : i32, i32
  }
  func.func @transform_1(%arg0: i32) -> (i32, i32) {
    %c0_i32 = arith.constant 0 : i32
    %c0_i32_0 = arith.constant 0 : i32
    return %c0_i32, %arg0 : i32, i32
  }
  func.func @transform_2(%arg0: i32) -> (i32, i32) {
    %c0_i32 = arith.constant 0 : i32
    %c0_i32_0 = arith.constant 0 : i32
    return %c0_i32, %arg0 : i32, i32
  }
  func.func @transform_3(%arg0: i32) -> (i32, i32) {
    %c0_i32 = arith.constant 0 : i32
    %c0_i32_0 = arith.constant 0 : i32
    return %c0_i32, %arg0 : i32, i32
  }
}

</mosaic_0001>

<llo_original>
// kernel: edge_network_forward.1
$region0: #{edge_network_forward.1}
  #allocation0 [shape = 'u32[]', space=smem, size = 0x4, offset = 0x4, fixed_abs, tag = 'smem constant byte address 0x4 - core index']
  #allocation1 [shape = 'u32[144,128]{1,0:T(1,128)}', space=vmem, size = 0x12000, scoped, tag = 'internal scratch']
  %s0 = inlined_call_operand.vmem [shape: f32[1,32], index: 0, kind: input, shape index: {}]
  %s1 = inlined_call_operand.hbm [shape: f32[32,128], index: 1, kind: input, shape index: {}]
  %s2 = inlined_call_operand.vmem [shape: f32[1,128], index: 2, kind: input, shape index: {}]
  %s3 = inlined_call_operand.vmem [shape: f32[1,128], index: 3, kind: output, shape index: {}]
  %s4 = sld [smem:[#allocation0]]
  $region26: #{edge_network_forward.1} parent=0
    _
  %s6 = ssub.s32 1, %s4
  %s7 = scalar_select 0, %s6, %s4
  $region1: #{edge_network_forward.1} parent=0
    #allocation2 [shape = 'u8[16384]{0}', space=vmem, size = 0x4000, scoped, tag = 'input window, operand 1, single buffered']
    #allocation3 [shape = 's32[1]{0}', space=sflag, size = 0x4, scoped, tag = 'scoped memory for edge_network_forward.1']
    %8 = vsyncpa [#allocation3], 0
    // Predicated region
    $region2: #{edge_network_forward.1} parent=1 // pred_check
      _
    $region3: #{edge_network_forward.1} parent=1 // pred_check_branch
      %10 = sbr.rel (0) target = $region5
    $region4: #{edge_network_forward.1} parent=1 // pred_region
      _
    $region5: #{edge_network_forward.1} parent=1 // pred_fallthru
      _
    // Predicated region
    $region6: #{edge_network_forward.1} parent=1 // pred_check
      _
    $region7: #{edge_network_forward.1} parent=1 // pred_check_branch
      %12 = sbr.rel (0) target = $region9
    $region8: #{edge_network_forward.1} parent=1 // pred_region
      %s14 = ssub.s32 512, 512
      %15 = vsyncadd [#allocation3], %s14
      %s16 = sshll.u32 [#allocation2], 4
      %s17 = int_to_ptr.vmem [resolvable:$true] %s16
      %22 = dma.hbm_to_vmem [thread:$0]  %s1, 512, %s17, [#allocation3], 128, 128, 8
    $region9: #{edge_network_forward.1} parent=1 // pred_fallthru
      _
    // Predicated region
    $region10: #{edge_network_forward.1} parent=1 // pred_check
      _
    $region11: #{edge_network_forward.1} parent=1 // pred_check_branch
      %24 = sbr.rel (0) target = $region13
    $region12: #{edge_network_forward.1} parent=1 // pred_region
      _
    $region13: #{edge_network_forward.1} parent=1 // pred_fallthru
      _
    // Predicated region
    $region14: #{edge_network_forward.1} parent=1 // pred_check
      _
    $region15: #{edge_network_forward.1} parent=1 // pred_check_branch
      %26 = sbr.rel (0) target = $region17
    $region16: #{edge_network_forward.1} parent=1 // pred_region
      %27 = dma.done [#allocation3], 512
    $region17: #{edge_network_forward.1} parent=1 // pred_fallthru
      _
    %v28 = vld [vmem:[%s0] sm:$0x1]
    %v29 = vld [vmem:[#allocation2] sm:$0xff]
    %v30 = vld [vmem:[#allocation2 + $0x8] sm:$0xff]
    %v31 = vld [vmem:[#allocation2 + $0x10] sm:$0xff]
    %v32 = vld [vmem:[#allocation2 + $0x18] sm:$0xff]
    %v33 = vld [vmem:[%s2] sm:$0x1]
    %vm34 = vcmask 261120
    %v36 = vsel %vm34, %v28, 0
    %38 = vmatprep.subr.mxu0 0.0
    %39 = vmatpush1.msra.mxu0 %v29
    %40 = vmatprep.subr.mxu0 0.0
    %41 = vmatpush1.msra.mxu0 %v30
    %42 = vmatprep.subr.mxu0 0.0
    %43 = vmatpush1.msra.mxu0 %v31
    %44 = vmatprep.subr.mxu0 0.0
    %45 = vmatpush1.msra.mxu0 %v32
    %46 = vmatprep.subr.mxu0 0.0
    %47 = vmatpush1.msra.mxu0 0.0
    %48 = vmatprep.subr.mxu0 0.0
    %49 = vmatpush1.msra.mxu0 0.0
    %50 = vmatprep.subr.mxu0 0.0
    %51 = vmatpush1.msra.mxu0 0.0
    %52 = vmatprep.subr.mxu0 0.0
    %53 = vmatpush1.msra.mxu0 0.0
    %54 = vmatprep.subr.mxu0 0.0
    %55 = vmatpush1.msra.mxu0 0.0
    %56 = vmatprep.subr.mxu0 0.0
    %57 = vmatpush1.msra.mxu0 0.0
    %58 = vmatprep.subr.mxu0 0.0
    %59 = vmatpush1.msra.mxu0 0.0
    %60 = vmatprep.subr.mxu0 0.0
    %61 = vmatpush1.msra.mxu0 0.0
    %62 = vmatprep.subr.mxu0 0.0
    %63 = vmatpush1.msra.mxu0 0.0
    %64 = vmatprep.subr.mxu0 0.0
    %65 = vmatpush1.msra.mxu0 0.0
    %66 = vmatprep.subr.mxu0 0.0
    %67 = vmatpush1.msra.mxu0 0.0
    %68 = vmatprep.subr.mxu0 0.0
    %69 = vmatpush1.msra.mxu0 0.0
    %70 = vmatprep.subr.mxu0 0.0
    %71 = vmatpush1.msra.mxu0 0.0
    %72 = vmatprep.subr.mxu0 0.0
    %73 = vmatpush1.msra.mxu0 0.0
    %74 = vmatprep.subr.mxu0 0.0
    %75 = vmatpush1.msra.mxu0 0.0
    %76 = vmatprep.subr.mxu0 0.0
    %77 = vmatpush1.msra.mxu0 0.0
    %78 = vmatprep.subr.mxu0 0.0
    %79 = vmatpush1.msra.mxu0 0.0
    %80 = vmatprep.subr.mxu0 0.0
    %81 = vmatpush1.msra.mxu0 0.0
    %82 = vmatprep.subr.mxu0 0.0
    %83 = vmatpush1.msra.mxu0 0.0
    %84 = vmatprep.subr.mxu0 0.0
    %85 = vmatpush1.msra.mxu0 0.0
    %86 = vmatprep.subr.mxu0 0.0
    %87 = vmatpush1.msra.mxu0 0.0
    %88 = vmatprep.subr.mxu0 0.0
    %89 = vmatpush1.msra.mxu0 0.0
    %90 = vmatprep.subr.mxu0 0.0
    %91 = vmatpush1.msra.mxu0 0.0
    %92 = vmatprep.subr.mxu0 0.0
    %93 = vmatpush1.msra.mxu0 0.0
    %94 = vmatprep.subr.mxu0 0.0
    %95 = vmatpush1.msra.mxu0 0.0
    %96 = vmatprep.subr.mxu0 0.0
    %97 = vmatpush1.msra.mxu0 0.0
    %98 = vmatprep.subr.mxu0 0.0
    %99 = vmatpush1.msra.mxu0 0.0
    %100 = vmatprep.subr.mxu0 0.0
    %101 = vmatpush1.msra.mxu0 0.0
    %102 = vmatprep.mubr.f32.mxu0 0.0
    %103 = vmatmul.mubr.f32.gmra.mrb[0].mxu0 %v36
    %v104 = vpop.f32.mrb[0].mxu0
    %v105 = vadd.f32 %v33, %v104
    %v106 = vpop.f32.mrb[0].mxu0
    %107 = vdwg.mxu0
    %108 = vst [vmem:[%s3] sm:$0x1] %v105
    // Predicated region
    $region18: #{edge_network_forward.1} parent=1 // pred_check
      _
    $region19: #{edge_network_forward.1} parent=1 // pred_check_branch
      %110 = sbr.rel (0) target = $region21
    $region20: #{edge_network_forward.1} parent=1 // pred_region
      _
    $region21: #{edge_network_forward.1} parent=1 // pred_fallthru
      _
    // Predicated region
    $region22: #{edge_network_forward.1} parent=1 // pred_check
      _
    $region23: #{edge_network_forward.1} parent=1 // pred_check_branch
      %112 = sbr.rel (0) target = $region25
    $region24: #{edge_network_forward.1} parent=1 // pred_region
      _
    $region25: #{edge_network_forward.1} parent=1 // pred_fallthru
      _
    %113 = vsyncpa [#allocation3], 1

</llo_original>
